<compile_context>
chip_gen: v7x
topology: tpu7x:2x2x1
jax: 0.10.0
libtpu: 0.0.40
codegen_flags: <defaults>
</compile_context>

<pallas_src>
import functools

import numpy as np

import jax
import jax.numpy as jnp
from jax import lax
from jax.experimental import pallas as pl
from jax.experimental.pallas import tpu as pltpu


def _self_att_kernel(x_ref, masks_ref, dw_ref, wqkv_ref, wout_ref, o_ref,
                     *, dim, h, w, fast_math):
    hw = h * w
    eps = 1e-12

    x = x_ref[...].astype(jnp.float32)        # (c, hw)  lane-dense activations
    dw = dw_ref[...].astype(jnp.float32)      # (c, 9)   depthwise taps
    masks = masks_ref[...]                    # (8, hw)  {0,1} halo masks
    mm_dtype = wqkv_ref.dtype                 # bf16 (default) or f32

    # ---- depthwise 3x3 conv, stride 1, padding 1, in flat (c, hw) layout ----
    # tap(di,dj)[q] = x[q + (di-1)*w + (dj-1)] when the neighbour lies inside
    # the image, else 0.  Rolls use the XLU slot; masks are one sublane row
    # each (precomputed in the wrapper) and broadcast across channels, so no
    # per-step (c, hw)-sized mask construction.
    y = dw[:, 4:5] * x                        # centre tap, never masked
    t = 0
    for di in range(3):
        for dj in range(3):
            if di == 1 and dj == 1:
                continue
            off = (di - 1) * w + (dj - 1)
            tap = pltpu.roll(x, shift=(-off) % hw, axis=1)
            y = y + dw[:, di * 3 + dj:di * 3 + dj + 1] * (tap * masks[t:t + 1, :])
            t += 1

    # ---- fused 1x1 qkv conv: single (3c, c) @ (c, hw) MXU matmul ----
    qkv = jnp.dot(wqkv_ref[...], y.astype(mm_dtype),
                  preferred_element_type=jnp.float32)          # (3c, hw) f32
    q = qkv[0:dim]                # sublane-aligned slices (c % 8 == 0)
    k = qkv[dim:2 * dim]
    v = qkv[2 * dim:3 * dim]

    # ---- channel attention for this image ----
    # F.normalize(p=2, dim=-1, eps=1e-12): x / max(||x||, eps) via rsqrt (EUP).
    qss = jnp.sum(q * q, axis=-1, keepdims=True)
    kss = jnp.sum(k * k, axis=-1, keepdims=True)
    qn = q * jnp.where(qss >= eps * eps, lax.rsqrt(qss), 1.0 / eps)
    kn = k * jnp.where(kss >= eps * eps, lax.rsqrt(kss), 1.0 / eps)

    s = lax.dot_general(qn.astype(mm_dtype), kn.astype(mm_dtype),
                        (((1,), (1,)), ((), ())),
                        preferred_element_type=jnp.float32)    # (c, c)
    s = s - jnp.max(s, axis=-1, keepdims=True)
    p = jnp.exp(s)
    p = p * pl.reciprocal(jnp.sum(p, axis=-1, keepdims=True), approx=fast_math)

    out = jnp.dot(p.astype(mm_dtype), v.astype(mm_dtype),
                  preferred_element_type=jnp.float32)          # (c, hw)

    # ---- project_out (1x1 conv == matmul); one full-width lane-dense store ----
    final = jnp.dot(wout_ref[...], out.astype(mm_dtype),
                    preferred_element_type=jnp.float32)        # (c, hw)
    o_ref[...] = final.astype(o_ref.dtype)


def _halo_masks(h, w):
    """(8, hw) f32 validity masks for the 8 non-center 3x3 taps (row order
    matches the kernel's di/dj loop)."""
    hw = h * w
    pos = np.arange(hw)
    row, col = pos // w, pos % w
    rows = []
    for di in range(3):
        for dj in range(3):
            if di == 1 and dj == 1:
                continue
            valid = ((row + di - 1 >= 0) & (row + di - 1 < h) &
                     (col + dj - 1 >= 0) & (col + dj - 1 < w))
            rows.append(valid.astype(np.float32))
    return jnp.asarray(np.stack(rows, axis=0))


def _physical_vmem_bytes():
    try:
        info = pltpu.get_tpu_info()
        cap = getattr(info, "vmem_capacity_bytes", None)
        if cap:
            return int(cap)
    except Exception:
        pass
    return 64 << 20  # conservative fallback (v7x per-TC VMEM)


def _vmem_limit_bytes(c, hw, in_itemsize):
    # ~a dozen live f32 copies of (c, hw) / (3c, hw) intermediates plus
    # double-buffered in/out blocks and the small weight tiles.
    est = 16 * c * hw * 4 + 4 * c * hw * in_itemsize + (2 << 20)
    cap = _physical_vmem_bytes()
    return int(min(max(est, 48 << 20), cap * 3 // 4))


def self_att_forward(x, dw_weight, wqkv_weight, wout_weight, *,
                     use_bf16_mxu=True):
    """x: (b, c, h, w) NCHW. Returns (b, c, h, w).

    use_bf16_mxu=True (default): bf16 MXU operands with f32 accumulation
    (f32 x f32 matmuls are multi-pass on the MXU, ~3-6x slower).  Pass
    use_bf16_mxu=False for the strict-f32 path.
    """
    b, c, h, w = x.shape
    hw = h * w
    assert c % 8 == 0, "channels must be a multiple of 8 (f32 sublane tiling)"
    assert wqkv_weight.shape == (3 * c, c)
    # Perf note: hw % 128 == 0 keeps the per-image block lane-dense (unmasked
    # full-width stores); non-multiples still work but store partial vregs.

    x_flat = x.reshape(b, c, hw)            # metadata-only reshape, no HBM copy
    dw = dw_weight.reshape(c, 9)
    masks = _halo_masks(h, w)               # (8, hw)

    mm_dtype = jnp.bfloat16 if use_bf16_mxu else jnp.float32
    wqkv = wqkv_weight.astype(mm_dtype)
    wout = wout_weight.astype(mm_dtype)

    kernel = functools.partial(_self_att_kernel, dim=c, h=h, w=w,
                               fast_math=use_bf16_mxu)

    out_flat = pl.pallas_call(
        kernel,
        out_shape=jax.ShapeDtypeStruct((b, c, hw), x.dtype),
        grid=(b,),                          # one image per step; >=2 parallel
        in_specs=[                          # steps feed both v7x TensorCores
            pl.BlockSpec((None, c, hw), lambda i: (i, 0, 0)),   # activations
            pl.BlockSpec((8, hw), lambda i: (0, 0)),            # halo masks
            pl.BlockSpec((c, 9), lambda i: (0, 0)),             # depthwise taps
            pl.BlockSpec((3 * c, c), lambda i: (0, 0)),         # fused W_qkv
            pl.BlockSpec((c, c), lambda i: (0, 0)),             # W_out
        ],
        out_specs=pl.BlockSpec((None, c, hw), lambda i: (i, 0, 0)),
        compiler_params=pltpu.CompilerParams(
            dimension_semantics=("parallel",),
            vmem_limit_bytes=_vmem_limit_bytes(c, hw, x.dtype.itemsize)),
    )(x_flat, masks, dw, wqkv, wout)

    # TODO(synk): for b == 1 on v7x, add a second parallel grid axis splitting
    # hw (with a two-pass norm/attention accumulation) so both TCs get work.
    return out_flat.reshape(b, c, h, w)


def self_att_reference(x, dw_weight, wqkv_weight, wout_weight):
    """Pure-JAX reference matching the PyTorch module semantics."""
    b, c, h, w = x.shape
    dw = dw_weight[:, None, :, :]                              # (c,1,3,3) OIHW
    y = lax.conv_general_dilated(
        x, dw, window_strides=(1, 1), padding=((1, 1), (1, 1)),
        dimension_numbers=("NCHW", "OIHW", "NCHW"),
        feature_group_count=c)
    qkv = jnp.einsum("oc,bchw->bohw", wqkv_weight, y)
    q, k, v = jnp.split(qkv, 3, axis=1)
    q = q.reshape(b, c, h * w)
    k = k.reshape(b, c, h * w)
    v = v.reshape(b, c, h * w)
    qn = q / jnp.maximum(jnp.linalg.norm(q, axis=-1, keepdims=True), 1e-12)
    kn = k / jnp.maximum(jnp.linalg.norm(k, axis=-1, keepdims=True), 1e-12)
    attn = jnp.einsum("bcn,bdn->bcd", qn, kn)
    attn = jax.nn.softmax(attn, axis=-1)
    out = jnp.einsum("bcd,bdn->bcn", attn, v).reshape(b, c, h, w)
    return jnp.einsum("oc,bchw->bohw", wout_weight, out)


if __name__ == "__main__":
    b, dim, h, w = 2, 8, 16, 16    # c multiple of 8; hw = 256 (multiple of 128)

    key = jax.random.PRNGKey(0)
    kx, kdw, kqkv, kout = jax.random.split(key, 4)

    x = jax.random.normal(kx, (b, dim, h, w), dtype=jnp.float32)
    # Conv2d(dim, dim, 3, groups=dim, bias=False) weight (dim,1,3,3) -> (dim,3,3)
    dw_weight = jax.random.normal(kdw, (dim, 3, 3), dtype=jnp.float32) * 0.2
    # Conv2d(dim, 3*dim, 1, bias=False) weight (3*dim,dim,1,1) -> (3*dim,dim)
    wqkv_weight = jax.random.normal(kqkv, (3 * dim, dim), dtype=jnp.float32) * 0.2
    # Conv2d(dim, dim, 1, bias=False) weight (dim,dim,1,1) -> (dim,dim)
    wout_weight = jax.random.normal(kout, (dim, dim), dtype=jnp.float32) * 0.2

    ref = self_att_reference(x, dw_weight, wqkv_weight, wout_weight)

    # Strict f32 path (f32 MXU operands, exact reciprocal).
    out = self_att_forward(x, dw_weight, wqkv_weight, wout_weight,
                           use_bf16_mxu=False)
    out = jax.block_until_ready(out)
    assert out.shape == (b, dim, h, w)
    assert jnp.allclose(out, ref, rtol=1e-4, atol=1e-4)

    # Default fast path (bf16 MXU operands + approximate EUP softmax recip).
    out_fast = self_att_forward(x, dw_weight, wqkv_weight, wout_weight)
    out_fast = jax.block_until_ready(out_fast)
    assert jnp.allclose(out_fast, ref, rtol=5e-2, atol=5e-2)

    print("KERNEL_OK")
</pallas_src>

<mosaic_0001>
module attributes {stable_mosaic.version = 11 : i64} {
  func.func @_self_att_kernel(%arg0: i32, %arg1: memref<1x8x256xf32, #tpu.memory_space<vmem>>, %arg2: memref<8x256xf32, #tpu.memory_space<vmem>>, %arg3: memref<8x9xf32, #tpu.memory_space<vmem>>, %arg4: memref<24x8xf32, #tpu.memory_space<vmem>>, %arg5: memref<8x8xf32, #tpu.memory_space<vmem>>, %arg6: memref<1x8x256xf32, #tpu.memory_space<vmem>>) attributes {dimension_semantics = [#tpu.dimension_semantics<parallel>], iteration_bounds = array<i64: 2>, scalar_prefetch = 0 : i64, scratch_operands = 0 : i64, tpu.core_type = #tpu.core_type<tc>, window_params = [{transform_indices = @transform_0, window_bounds = array<i64: 1, 8, 256>}, {pipeline_mode = #tpu.pipeline_mode<synchronous>, transform_indices = @transform_1, window_bounds = array<i64: 8, 256>}, {pipeline_mode = #tpu.pipeline_mode<synchronous>, transform_indices = @transform_2, window_bounds = array<i64: 8, 9>}, {pipeline_mode = #tpu.pipeline_mode<synchronous>, transform_indices = @transform_3, window_bounds = array<i64: 24, 8>}, {pipeline_mode = #tpu.pipeline_mode<synchronous>, transform_indices = @transform_4, window_bounds = array<i64: 8, 8>}, {transform_indices = @transform_5, window_bounds = array<i64: 1, 8, 256>}]} {
    %c0 = arith.constant 0 : index
    %c0_0 = arith.constant 0 : index
    %c0_1 = arith.constant 0 : index
    %0 = vector.load %arg1[%c0, %c0_0, %c0_1] : memref<1x8x256xf32, #tpu.memory_space<vmem>>, vector<1x8x256xf32>
    %1 = vector.shape_cast %0 : vector<1x8x256xf32> to vector<8x256xf32>
    %c0_2 = arith.constant 0 : index
    %c0_3 = arith.constant 0 : index
    %2 = vector.load %arg3[%c0_2, %c0_3] : memref<8x9xf32, #tpu.memory_space<vmem>>, vector<8x9xf32>
    %c0_4 = arith.constant 0 : index
    %c0_5 = arith.constant 0 : index
    %3 = vector.load %arg2[%c0_4, %c0_5] : memref<8x256xf32, #tpu.memory_space<vmem>>, vector<8x256xf32>
    %4 = vector.extract_strided_slice %2 {offsets = [0, 4], sizes = [8, 1], strides = [1, 1]} : vector<8x9xf32> to vector<8x1xf32>
    %5 = vector.broadcast %4 : vector<8x1xf32> to vector<8x256xf32>
    %6 = arith.mulf %5, %1 : vector<8x256xf32>
    %c17_i32 = arith.constant 17 : i32
    %7 = tpu.dynamic_rotate %1 by %c17_i32 dim 1 : vector<8x256xf32>, i32 -> vector<8x256xf32>
    %8 = vector.extract_strided_slice %2 {offsets = [0, 0], sizes = [8, 1], strides = [1, 1]} : vector<8x9xf32> to vector<8x1xf32>
    %9 = vector.extract_strided_slice %3 {offsets = [0, 0], sizes = [1, 256], strides = [1, 1]} : vector<8x256xf32> to vector<1x256xf32>
    %10 = vector.broadcast %9 : vector<1x256xf32> to vector<8x256xf32>
    %11 = arith.mulf %7, %10 : vector<8x256xf32>
    %12 = vector.broadcast %8 : vector<8x1xf32> to vector<8x256xf32>
    %13 = arith.mulf %12, %11 : vector<8x256xf32>
    %14 = arith.addf %6, %13 : vector<8x256xf32>
    %c16_i32 = arith.constant 16 : i32
    %15 = tpu.dynamic_rotate %1 by %c16_i32 dim 1 : vector<8x256xf32>, i32 -> vector<8x256xf32>
    %16 = vector.extract_strided_slice %2 {offsets = [0, 1], sizes = [8, 1], strides = [1, 1]} : vector<8x9xf32> to vector<8x1xf32>
    %17 = vector.extract_strided_slice %3 {offsets = [1, 0], sizes = [1, 256], strides = [1, 1]} : vector<8x256xf32> to vector<1x256xf32>
    %18 = vector.broadcast %17 : vector<1x256xf32> to vector<8x256xf32>
    %19 = arith.mulf %15, %18 : vector<8x256xf32>
    %20 = vector.broadcast %16 : vector<8x1xf32> to vector<8x256xf32>
    %21 = arith.mulf %20, %19 : vector<8x256xf32>
    %22 = arith.addf %14, %21 : vector<8x256xf32>
    %c15_i32 = arith.constant 15 : i32
    %23 = tpu.dynamic_rotate %1 by %c15_i32 dim 1 : vector<8x256xf32>, i32 -> vector<8x256xf32>
    %24 = vector.extract_strided_slice %2 {offsets = [0, 2], sizes = [8, 1], strides = [1, 1]} : vector<8x9xf32> to vector<8x1xf32>
    %25 = vector.extract_strided_slice %3 {offsets = [2, 0], sizes = [1, 256], strides = [1, 1]} : vector<8x256xf32> to vector<1x256xf32>
    %26 = vector.broadcast %25 : vector<1x256xf32> to vector<8x256xf32>
    %27 = arith.mulf %23, %26 : vector<8x256xf32>
    %28 = vector.broadcast %24 : vector<8x1xf32> to vector<8x256xf32>
    %29 = arith.mulf %28, %27 : vector<8x256xf32>
    %30 = arith.addf %22, %29 : vector<8x256xf32>
    %c1_i32 = arith.constant 1 : i32
    %31 = tpu.dynamic_rotate %1 by %c1_i32 dim 1 : vector<8x256xf32>, i32 -> vector<8x256xf32>
    %32 = vector.extract_strided_slice %2 {offsets = [0, 3], sizes = [8, 1], strides = [1, 1]} : vector<8x9xf32> to vector<8x1xf32>
    %33 = vector.extract_strided_slice %3 {offsets = [3, 0], sizes = [1, 256], strides = [1, 1]} : vector<8x256xf32> to vector<1x256xf32>
    %34 = vector.broadcast %33 : vector<1x256xf32> to vector<8x256xf32>
    %35 = arith.mulf %31, %34 : vector<8x256xf32>
    %36 = vector.broadcast %32 : vector<8x1xf32> to vector<8x256xf32>
    %37 = arith.mulf %36, %35 : vector<8x256xf32>
    %38 = arith.addf %30, %37 : vector<8x256xf32>
    %c255_i32 = arith.constant 255 : i32
    %39 = tpu.dynamic_rotate %1 by %c255_i32 dim 1 : vector<8x256xf32>, i32 -> vector<8x256xf32>
    %40 = vector.extract_strided_slice %2 {offsets = [0, 5], sizes = [8, 1], strides = [1, 1]} : vector<8x9xf32> to vector<8x1xf32>
    %41 = vector.extract_strided_slice %3 {offsets = [4, 0], sizes = [1, 256], strides = [1, 1]} : vector<8x256xf32> to vector<1x256xf32>
    %42 = vector.broadcast %41 : vector<1x256xf32> to vector<8x256xf32>
    %43 = arith.mulf %39, %42 : vector<8x256xf32>
    %44 = vector.broadcast %40 : vector<8x1xf32> to vector<8x256xf32>
    %45 = arith.mulf %44, %43 : vector<8x256xf32>
    %46 = arith.addf %38, %45 : vector<8x256xf32>
    %c241_i32 = arith.constant 241 : i32
    %47 = tpu.dynamic_rotate %1 by %c241_i32 dim 1 : vector<8x256xf32>, i32 -> vector<8x256xf32>
    %48 = vector.extract_strided_slice %2 {offsets = [0, 6], sizes = [8, 1], strides = [1, 1]} : vector<8x9xf32> to vector<8x1xf32>
    %49 = vector.extract_strided_slice %3 {offsets = [5, 0], sizes = [1, 256], strides = [1, 1]} : vector<8x256xf32> to vector<1x256xf32>
    %50 = vector.broadcast %49 : vector<1x256xf32> to vector<8x256xf32>
    %51 = arith.mulf %47, %50 : vector<8x256xf32>
    %52 = vector.broadcast %48 : vector<8x1xf32> to vector<8x256xf32>
    %53 = arith.mulf %52, %51 : vector<8x256xf32>
    %54 = arith.addf %46, %53 : vector<8x256xf32>
    %c240_i32 = arith.constant 240 : i32
    %55 = tpu.dynamic_rotate %1 by %c240_i32 dim 1 : vector<8x256xf32>, i32 -> vector<8x256xf32>
    %56 = vector.extract_strided_slice %2 {offsets = [0, 7], sizes = [8, 1], strides = [1, 1]} : vector<8x9xf32> to vector<8x1xf32>
    %57 = vector.extract_strided_slice %3 {offsets = [6, 0], sizes = [1, 256], strides = [1, 1]} : vector<8x256xf32> to vector<1x256xf32>
    %58 = vector.broadcast %57 : vector<1x256xf32> to vector<8x256xf32>
    %59 = arith.mulf %55, %58 : vector<8x256xf32>
    %60 = vector.broadcast %56 : vector<8x1xf32> to vector<8x256xf32>
    %61 = arith.mulf %60, %59 : vector<8x256xf32>
    %62 = arith.addf %54, %61 : vector<8x256xf32>
    %c239_i32 = arith.constant 239 : i32
    %63 = tpu.dynamic_rotate %1 by %c239_i32 dim 1 : vector<8x256xf32>, i32 -> vector<8x256xf32>
    %64 = vector.extract_strided_slice %2 {offsets = [0, 8], sizes = [8, 1], strides = [1, 1]} : vector<8x9xf32> to vector<8x1xf32>
    %65 = vector.extract_strided_slice %3 {offsets = [7, 0], sizes = [1, 256], strides = [1, 1]} : vector<8x256xf32> to vector<1x256xf32>
    %66 = vector.broadcast %65 : vector<1x256xf32> to vector<8x256xf32>
    %67 = arith.mulf %63, %66 : vector<8x256xf32>
    %68 = vector.broadcast %64 : vector<8x1xf32> to vector<8x256xf32>
    %69 = arith.mulf %68, %67 : vector<8x256xf32>
    %70 = arith.addf %62, %69 : vector<8x256xf32>
    %c0_6 = arith.constant 0 : index
    %c0_7 = arith.constant 0 : index
    %71 = vector.load %arg4[%c0_6, %c0_7] : memref<24x8xf32, #tpu.memory_space<vmem>>, vector<24x8xf32>
    %cst = arith.constant dense<0.000000e+00> : vector<24x256xf32>
    %72 = tpu.matmul %71, %70, %cst {dimension_numbers = #tpu.dot_dimension_numbers<[1], [0], [0], [1], [0, 0, 1, 1], [], []>} : vector<24x8xf32>, vector<8x256xf32>, vector<24x256xf32> -> vector<24x256xf32>
    %73 = vector.extract_strided_slice %72 {offsets = [0, 0], sizes = [8, 256], strides = [1, 1]} : vector<24x256xf32> to vector<8x256xf32>
    %74 = vector.extract_strided_slice %72 {offsets = [8, 0], sizes = [8, 256], strides = [1, 1]} : vector<24x256xf32> to vector<8x256xf32>
    %75 = vector.extract_strided_slice %72 {offsets = [16, 0], sizes = [8, 256], strides = [1, 1]} : vector<24x256xf32> to vector<8x256xf32>
    %76 = arith.mulf %73, %73 : vector<8x256xf32>
    %cst_8 = arith.constant dense<0.000000e+00> : vector<8xf32>
    %77 = vector.multi_reduction <add>, %76, %cst_8 [1] : vector<8x256xf32> to vector<8xf32>
    %78 = vector.shape_cast %77 : vector<8xf32> to vector<8x1xf32>
    %79 = arith.mulf %74, %74 : vector<8x256xf32>
    %cst_9 = arith.constant dense<0.000000e+00> : vector<8xf32>
    %80 = vector.multi_reduction <add>, %79, %cst_9 [1] : vector<8x256xf32> to vector<8xf32>
    %81 = vector.shape_cast %80 : vector<8xf32> to vector<8x1xf32>
    %cst_10 = arith.constant 1.000000e-24 : f32
    %82 = vector.broadcast %cst_10 : f32 to vector<8x1xf32>
    %83 = arith.cmpf oge, %78, %82 : vector<8x1xf32>
    %84 = math.rsqrt %78 : vector<8x1xf32>
    %cst_11 = arith.constant 9.99999995E+11 : f32
    %85 = vector.broadcast %cst_11 : f32 to vector<8x1xf32>
    %86 = arith.select %83, %84, %85 : vector<8x1xi1>, vector<8x1xf32>
    %87 = vector.broadcast %86 : vector<8x1xf32> to vector<8x256xf32>
    %88 = arith.mulf %73, %87 : vector<8x256xf32>
    %cst_12 = arith.constant 1.000000e-24 : f32
    %89 = vector.broadcast %cst_12 : f32 to vector<8x1xf32>
    %90 = arith.cmpf oge, %81, %89 : vector<8x1xf32>
    %91 = math.rsqrt %81 : vector<8x1xf32>
    %cst_13 = arith.constant 9.99999995E+11 : f32
    %92 = vector.broadcast %cst_13 : f32 to vector<8x1xf32>
    %93 = arith.select %90, %91, %92 : vector<8x1xi1>, vector<8x1xf32>
    %94 = vector.broadcast %93 : vector<8x1xf32> to vector<8x256xf32>
    %95 = arith.mulf %74, %94 : vector<8x256xf32>
    %cst_14 = arith.constant dense<0.000000e+00> : vector<8x8xf32>
    %96 = tpu.matmul %88, %95, %cst_14 {dimension_numbers = #tpu.dot_dimension_numbers<[1], [1], [0], [0], [0, 0, 1, 0], [], []>} : vector<8x256xf32>, vector<8x256xf32>, vector<8x8xf32> -> vector<8x8xf32>
    %cst_15 = arith.constant dense<0xFF800000> : vector<8xf32>
    %97 = vector.multi_reduction <maximumf>, %96, %cst_15 [1] : vector<8x8xf32> to vector<8xf32>
    %98 = vector.shape_cast %97 : vector<8xf32> to vector<8x1xf32>
    %99 = vector.broadcast %98 : vector<8x1xf32> to vector<8x8xf32>
    %100 = arith.subf %96, %99 : vector<8x8xf32>
    %101 = math.exp %100 : vector<8x8xf32>
    %cst_16 = arith.constant dense<0.000000e+00> : vector<8xf32>
    %102 = vector.multi_reduction <add>, %101, %cst_16 [1] : vector<8x8xf32> to vector<8xf32>
    %103 = vector.shape_cast %102 : vector<8xf32> to vector<8x1xf32>
    %104 = tpu.reciprocal %103 : vector<8x1xf32> -> vector<8x1xf32>
    %105 = vector.broadcast %104 : vector<8x1xf32> to vector<8x8xf32>
    %106 = arith.mulf %101, %105 : vector<8x8xf32>
    %cst_17 = arith.constant dense<0.000000e+00> : vector<8x256xf32>
    %107 = tpu.matmul %106, %75, %cst_17 {dimension_numbers = #tpu.dot_dimension_numbers<[1], [0], [0], [1], [0, 0, 1, 1], [], []>} : vector<8x8xf32>, vector<8x256xf32>, vector<8x256xf32> -> vector<8x256xf32>
    %c0_18 = arith.constant 0 : index
    %c0_19 = arith.constant 0 : index
    %108 = vector.load %arg5[%c0_18, %c0_19] : memref<8x8xf32, #tpu.memory_space<vmem>>, vector<8x8xf32>
    %cst_20 = arith.constant dense<0.000000e+00> : vector<8x256xf32>
    %109 = tpu.matmul %108, %107, %cst_20 {dimension_numbers = #tpu.dot_dimension_numbers<[1], [0], [0], [1], [0, 0, 1, 1], [], []>} : vector<8x8xf32>, vector<8x256xf32>, vector<8x256xf32> -> vector<8x256xf32>
    %c0_21 = arith.constant 0 : index
    %c0_22 = arith.constant 0 : index
    %c0_23 = arith.constant 0 : index
    %110 = vector.load %arg6[%c0_21, %c0_22, %c0_23] : memref<1x8x256xf32, #tpu.memory_space<vmem>>, vector<1x8x256xf32>
    %111 = vector.shape_cast %110 : vector<1x8x256xf32> to vector<8x256xf32>
    %112 = vector.shape_cast %109 : vector<8x256xf32> to vector<1x8x256xf32>
    tpu.vector_store %arg6[%c0_21, %c0_22, %c0_23], %112 {strides = array<i32>} : memref<1x8x256xf32, #tpu.memory_space<vmem>>, vector<1x8x256xf32>,
    return
  }
  func.func @transform_0(%arg0: i32) -> (i32, i32, i32) {
    %c0_i32 = arith.constant 0 : i32
    %c0_i32_0 = arith.constant 0 : i32
    %c0_i32_1 = arith.constant 0 : i32
    return %arg0, %c0_i32, %c0_i32_0 : i32, i32, i32
  }
  func.func @transform_1(%arg0: i32) -> (i32, i32) {
    %c0_i32 = arith.constant 0 : i32
    %c0_i32_0 = arith.constant 0 : i32
    %c0_i32_1 = arith.constant 0 : i32
    return %c0_i32, %c0_i32_0 : i32, i32
  }
  func.func @transform_2(%arg0: i32) -> (i32, i32) {
    %c0_i32 = arith.constant 0 : i32
    %c0_i32_0 = arith.constant 0 : i32
    %c0_i32_1 = arith.constant 0 : i32
    return %c0_i32, %c0_i32_0 : i32, i32
  }
  func.func @transform_3(%arg0: i32) -> (i32, i32) {
    %c0_i32 = arith.constant 0 : i32
    %c0_i32_0 = arith.constant 0 : i32
    %c0_i32_1 = arith.constant 0 : i32
    return %c0_i32, %c0_i32_0 : i32, i32
  }
  func.func @transform_4(%arg0: i32) -> (i32, i32) {
    %c0_i32 = arith.constant 0 : i32
    %c0_i32_0 = arith.constant 0 : i32
    %c0_i32_1 = arith.constant 0 : i32
    return %c0_i32, %c0_i32_0 : i32, i32
  }
  func.func @transform_5(%arg0: i32) -> (i32, i32, i32) {
    %c0_i32 = arith.constant 0 : i32
    %c0_i32_0 = arith.constant 0 : i32
    %c0_i32_1 = arith.constant 0 : i32
    return %arg0, %c0_i32, %c0_i32_0 : i32, i32, i32
  }
}

</mosaic_0001>

<llo_original>
// kernel: tpu_custom_call.1
$region0: #{tpu_custom_call.1}
  #allocation0 [shape = 'u32[]', space=smem, size = 0x4, offset = 0x4, fixed_abs, tag = 'smem constant byte address 0x4 - core index']
  #allocation1 [shape = 'u32[144,128]{1,0:T(1,128)}', space=vmem, size = 0x12000, scoped, tag = 'internal scratch']
  %s0 = inlined_call_operand.vmem [shape: f32[2,8,256], index: 0, kind: input, shape index: {}]
  %s1 = inlined_call_operand.hbm [shape: f32[8,256], index: 1, kind: input, shape index: {}]
  %s2 = inlined_call_operand.hbm [shape: f32[8,9], index: 2, kind: input, shape index: {}]
  %s3 = inlined_call_operand.vmem [shape: f32[24,8], index: 3, kind: input, shape index: {}]
  %s4 = inlined_call_operand.hbm [shape: f32[8,8], index: 4, kind: input, shape index: {}]
  %s5 = inlined_call_operand.hbm [shape: f32[2,8,256], index: 5, kind: output, shape index: {}]
  %s6 = sld [smem:[#allocation0]]
  $region65: #{tpu_custom_call.1} parent=0
    _
  %s8 = ssub.s32 1, %s6
  %s9 = scalar_select 0, %s8, %s6
  $region1: #{tpu_custom_call.1} parent=0
    #allocation2 [shape = 'u8[8192]{0}', space=vmem, size = 0x2000, scoped, tag = 'input window, operand 1, single buffered']
    #allocation3 [shape = 's32[2]{0}', space=sflag, size = 0x8, scoped, tag = 'scoped memory for tpu_custom_call.1']
    #allocation4 [shape = 's32[2]{0}', space=sflag, size = 0x8, scoped, tag = 'scoped memory for tpu_custom_call.1']
    #allocation5 [shape = 'u8[4096]{0}', space=vmem, size = 0x1000, scoped, tag = 'input window, operand 2, single buffered']
    #allocation6 [shape = 's32[1]{0}', space=sflag, size = 0x4, scoped, tag = 'scoped memory for tpu_custom_call.1']
    #allocation7 [shape = 'u8[4096]{0}', space=vmem, size = 0x1000, scoped, tag = 'input window, operand 4, single buffered']
    #allocation8 [shape = 'u8[16384]{0}', space=vmem, size = 0x4000, scoped, tag = 'output window, operand 0']
    %10 = vsyncpa [#allocation3], 0
    %11 = vsyncpa [#allocation6], 0
    %12 = vsyncpa [#allocation4], 0
    %s13 = scalar_lea.sflag [#allocation4], 1
    %14 = vsyncpa %s13, 0
    loop: start=0, step=1, limit=4
    $region2: #{tpu_custom_call.1} parent=1 // loop_pre_header
      _
    $region3: #{tpu_custom_call.1} parent=1 // loop_header
      %s16 = sphi 0, %s20
      %p17 = scmp.ge.s32.totalorder %s16, 4
      %s26 = sphi 0, %s28
      %s29 = sphi 0, %s26
      %s30 = sphi 0, %s29
      %s46 = sphi 0, %s30
      %s50 = sphi 0, %s50
      %s52 = sphi 0, %s50
      %s53 = sphi 0, %s52
      %s67 = sphi 0, %s53
      %s71 = sphi 0, %s71
      %s73 = sphi 0, %s71
      %s74 = sphi 0, %s73
      %s88 = sphi 0, %s74
      %s92 = sphi 0, %s92
      %s94 = sphi 0, %s92
      %s95 = sphi 0, %s94
      %s109 = sphi 0, %s95
      %s113 = sphi 0, %s113
      %s115 = sphi 0, %s113
      %s116 = sphi 0, %s115
      %s130 = sphi 0, %s116
      %s136 = sphi 0, %s138
      %s139 = sphi 0, %s136
      %s140 = sphi 0, %s139
      %s156 = sphi 0, %s140
    $region4: #{tpu_custom_call.1} parent=1 // loop_header_branch
      %19 = sbr.rel (%p17) target = $region8
    $region5: #{tpu_custom_call.1} parent=1 // loop_body
      %s21 = ssub.s32 %s16, 1
      %s22 = ssub.s32 %s16, 2
      %s23 = sadd.s32 %s16, 1
      %s24 = ssub.s32 %s16, %s23
      %p25 = scmp.eq.s32.totalorder %s24, 0
      %s27 = sadd.s32 %s26, 1
      %s28 = scalar_select %p25, %s26, %s27
      %p31 = pneg %p25
      %p32 = scmp.eq.s32.totalorder %s16, 1
      %p33 = por %p31, %p32
      %p34 = scmp.ne.s32.totalorder %s26, %s29
      %p35 = scmp.eq.s32.totalorder %s16, 0
      %p36 = por %p34, %p35
      %p37 = scmp.ne.s32.totalorder %s26, %s29
      %p38 = scmp.eq.s32.totalorder %s21, 1
      %p39 = por %p37, %p38
      %p40 = scmp.ne.s32.totalorder %s29, %s30
      %p41 = scmp.eq.s32.totalorder %s21, 0
      %p42 = por %p40, %p41
      %p43 = scmp.ne.s32.totalorder %s29, %s30
      %p44 = scmp.eq.s32.totalorder %s22, 1
      %p45 = por %p43, %p44
      %p47 = scmp.ne.s32.totalorder %s30, %s46
      %p48 = scmp.eq.s32.totalorder %s22, 0
      %p49 = por %p47, %p48
      %s51 = sadd.s32 %s50, 1
      %p54 = scmp.eq.s32.totalorder %s16, 1
      %p55 = scmp.ne.s32.totalorder %s50, %s52
      %p56 = scmp.eq.s32.totalorder %s16, 0
      %p57 = por %p55, %p56
      %p58 = scmp.ne.s32.totalorder %s50, %s52
      %p59 = scmp.eq.s32.totalorder %s21, 1
      %p60 = por %p58, %p59
      %p61 = scmp.ne.s32.totalorder %s52, %s53
      %p62 = scmp.eq.s32.totalorder %s21, 0
      %p63 = por %p61, %p62
      %p64 = scmp.ne.s32.totalorder %s52, %s53
      %p65 = scmp.eq.s32.totalorder %s22, 1
      %p66 = por %p64, %p65
      %p68 = scmp.ne.s32.totalorder %s53, %s67
      %p69 = scmp.eq.s32.totalorder %s22, 0
      %p70 = por %p68, %p69
      %s72 = sadd.s32 %s71, 1
      %p75 = scmp.eq.s32.totalorder %s16, 1
      %p76 = scmp.ne.s32.totalorder %s71, %s73
      %p77 = scmp.eq.s32.totalorder %s16, 0
      %p78 = por %p76, %p77
      %p79 = scmp.ne.s32.totalorder %s71, %s73
      %p80 = scmp.eq.s32.totalorder %s21, 1
      %p81 = por %p79, %p80
      %p82 = scmp.ne.s32.totalorder %s73, %s74
      %p83 = scmp.eq.s32.totalorder %s21, 0
      %p84 = por %p82, %p83
      %p85 = scmp.ne.s32.totalorder %s73, %s74
      %p86 = scmp.eq.s32.totalorder %s22, 1
      %p87 = por %p85, %p86
      %p89 = scmp.ne.s32.totalorder %s74, %s88
      %p90 = scmp.eq.s32.totalorder %s22, 0
      %p91 = por %p89, %p90
      %s93 = sadd.s32 %s92, 1
      %p96 = scmp.eq.s32.totalorder %s16, 1
      %p97 = scmp.ne.s32.totalorder %s92, %s94
      %p98 = scmp.eq.s32.totalorder %s16, 0
      %p99 = por %p97, %p98
      %p100 = scmp.ne.s32.totalorder %s92, %s94
      %p101 = scmp.eq.s32.totalorder %s21, 1
      %p102 = por %p100, %p101
      %p103 = scmp.ne.s32.totalorder %s94, %s95
      %p104 = scmp.eq.s32.totalorder %s21, 0
      %p105 = por %p103, %p104
      %p106 = scmp.ne.s32.totalorder %s94, %s95
      %p107 = scmp.eq.s32.totalorder %s22, 1
      %p108 = por %p106, %p107
      %p110 = scmp.ne.s32.totalorder %s95, %s109
      %p111 = scmp.eq.s32.totalorder %s22, 0
      %p112 = por %p110, %p111
      %s114 = sadd.s32 %s113, 1
      %p117 = scmp.eq.s32.totalorder %s16, 1
      %p118 = scmp.ne.s32.totalorder %s113, %s115
      %p119 = scmp.eq.s32.totalorder %s16, 0
      %p120 = por %p118, %p119
      %p121 = scmp.ne.s32.totalorder %s113, %s115
      %p122 = scmp.eq.s32.totalorder %s21, 1
      %p123 = por %p121, %p122
      %p124 = scmp.ne.s32.totalorder %s115, %s116
      %p125 = scmp.eq.s32.totalorder %s21, 0
      %p126 = por %p124, %p125
      %p127 = scmp.ne.s32.totalorder %s115, %s116
      %p128 = scmp.eq.s32.totalorder %s22, 1
      %p129 = por %p127, %p128
      %p131 = scmp.ne.s32.totalorder %s116, %s130
      %p132 = scmp.eq.s32.totalorder %s22, 0
      %p133 = por %p131, %p132
      %s134 = ssub.s32 %s16, %s23
      %p135 = scmp.eq.s32.totalorder %s134, 0
      %s137 = sadd.s32 %s136, 1
      %s138 = scalar_select %p135, %s136, %s137
      %p141 = pneg %p135
      %p142 = scmp.eq.s32.totalorder %s16, 1
      %p143 = por %p141, %p142
      %p144 = scmp.ne.s32.totalorder %s136, %s139
      %p145 = scmp.eq.s32.totalorder %s16, 0
      %p146 = por %p144, %p145
      %p147 = scmp.ne.s32.totalorder %s136, %s139
      %p148 = scmp.eq.s32.totalorder %s21, 1
      %p149 = por %p147, %p148
      %p150 = scmp.ne.s32.totalorder %s139, %s140
      %p151 = scmp.eq.s32.totalorder %s21, 0
      %p152 = por %p150, %p151
      %p153 = scmp.ne.s32.totalorder %s139, %s140
      %p154 = scmp.eq.s32.totalorder %s22, 1
      %p155 = por %p153, %p154
      %p157 = scmp.ne.s32.totalorder %s140, %s156
      %p158 = scmp.eq.s32.totalorder %s22, 0
      %p159 = por %p157, %p158
      %p160 = scmp.le.s32.totalorder 1, %s16
      %p161 = scmp.lt.s32.totalorder %s16, 3
      %p162 = pnand %p160, %p161
      %p163 = pneg %p162
      // Predicated region
      $region9: #{tpu_custom_call.1} parent=5 // pred_check
        _
      $region10: #{tpu_custom_call.1} parent=5 // pred_check_branch
        %165 = sbr.rel (%p162) target = $region12
      $region11: #{tpu_custom_call.1} parent=5 // pred_region
        %s166 = ssub.s32 %s16, 1
        // Predicated region
        $region13: #{tpu_custom_call.1} parent=11 // pred_check
          %p167 = pneg %p63
        $region14: #{tpu_custom_call.1} parent=11 // pred_check_branch
          %169 = sbr.rel (%p167) target = $region16
        $region15: #{tpu_custom_call.1} parent=11 // pred_region
          %s171 = ssub.s32 256, 256
          %172 = vsyncadd [#allocation3], %s171
          %s174 = sshll.u32 [#allocation2], 4
          %s175 = int_to_ptr.vmem [resolvable:$true] %s174
          %177 = dma.hbm_to_vmem [thread:$0]  %s1, 256, %s175, [#allocation3]
        $region16: #{tpu_custom_call.1} parent=11 // pred_fallthru
          _
        // Predicated region
        $region17: #{tpu_custom_call.1} parent=11 // pred_check
          %p178 = pneg %p84
        $region18: #{tpu_custom_call.1} parent=11 // pred_check_branch
          %180 = sbr.rel (%p178) target = $region20
        $region19: #{tpu_custom_call.1} parent=11 // pred_region
          %s182 = ssub.s32 128, 128
          %183 = vsyncadd [#allocation6], %s182
          %s185 = sshll.u32 [#allocation5], 4
          %s186 = int_to_ptr.vmem [resolvable:$true] %s185
          %188 = dma.hbm_to_vmem [thread:$0]  %s2, 128, %s186, [#allocation6]
        $region20: #{tpu_custom_call.1} parent=11 // pred_fallthru
          _
        // Predicated region
        $region21: #{tpu_custom_call.1} parent=11 // pred_check
          %p189 = pneg %p105
        $region22: #{tpu_custom_call.1} parent=11 // pred_check_branch
          %191 = sbr.rel (%p189) target = $region24
        $region23: #{tpu_custom_call.1} parent=11 // pred_region
          _
        $region24: #{tpu_custom_call.1} parent=11 // pred_fallthru
          _
        // Predicated region
        $region25: #{tpu_custom_call.1} parent=11 // pred_check
          %p192 = pneg %p126
        $region26: #{tpu_custom_call.1} parent=11 // pred_check_branch
          %194 = sbr.rel (%p192) target = $region28
        $region27: #{tpu_custom_call.1} parent=11 // pred_region
          %s196 = ssub.s32 128, 128
          %197 = vsyncadd [#allocation6], %s196
          %s199 = sshll.u32 [#allocation7], 4
          %s200 = int_to_ptr.vmem [resolvable:$true] %s199
          %202 = dma.hbm_to_vmem [thread:$0]  %s4, 128, %s200, [#allocation6]
        $region28: #{tpu_custom_call.1} parent=11 // pred_fallthru
          _
      $region12: #{tpu_custom_call.1} parent=5 // pred_fallthru
        _
      %p203 = scmp.lt.s32.totalorder %s16, 2
      // Predicated region
      $region29: #{tpu_custom_call.1} parent=5 // pred_check
        %p204 = pneg %p203
      $region30: #{tpu_custom_call.1} parent=5 // pred_check_branch
        %206 = sbr.rel (%p204) target = $region32
      $region31: #{tpu_custom_call.1} parent=5 // pred_region
        // Predicated region
        $region33: #{tpu_custom_call.1} parent=31 // pred_check
          %p207 = pneg %p36
        $region34: #{tpu_custom_call.1} parent=31 // pred_check_branch
          %209 = sbr.rel (%p207) target = $region36
        $region35: #{tpu_custom_call.1} parent=31 // pred_region
          %p210 = scmp.lt.s32.totalorder %s16, 1
          %s211 = scalar_select %p210, %s16, 1
          %s212 = smul.addr %s211, 2
          %s213 = smul.addr %s212, 8
          %s214 = scalar_lea.vmem %s0, %s213
        $region36: #{tpu_custom_call.1} parent=31 // pred_fallthru
          _
      $region32: #{tpu_custom_call.1} parent=5 // pred_fallthru
        _
      %p215 = scmp.le.s32.totalorder 1, %s16
      %p216 = scmp.lt.s32.totalorder %s16, 3
      %p217 = pnand %p215, %p216
      %p218 = pneg %p217
      // Predicated region
      $region37: #{tpu_custom_call.1} parent=5 // pred_check
        _
      $region38: #{tpu_custom_call.1} parent=5 // pred_check_branch
        %220 = sbr.rel (%p217) target = $region40
      $region39: #{tpu_custom_call.1} parent=5 // pred_region
        %s221 = ssub.s32 %s16, 1
        // Predicated region
        $region41: #{tpu_custom_call.1} parent=39 // pred_check
          %p222 = pneg %p63
        $region42: #{tpu_custom_call.1} parent=39 // pred_check_branch
          %224 = sbr.rel (%p222) target = $region44
        $region43: #{tpu_custom_call.1} parent=39 // pred_region
          %225 = dma.done [#allocation3], 256
        $region44: #{tpu_custom_call.1} parent=39 // pred_fallthru
          _
        // Predicated region
        $region45: #{tpu_custom_call.1} parent=39 // pred_check
          %p226 = pneg %p84
        $region46: #{tpu_custom_call.1} parent=39 // pred_check_branch
          %228 = sbr.rel (%p226) target = $region48
        $region47: #{tpu_custom_call.1} parent=39 // pred_region
          %229 = dma.done [#allocation6], 128
        $region48: #{tpu_custom_call.1} parent=39 // pred_fallthru
          _
        // Predicated region
        $region49: #{tpu_custom_call.1} parent=39 // pred_check
          %p230 = pneg %p126
        $region50: #{tpu_custom_call.1} parent=39 // pred_check_branch
          %232 = sbr.rel (%p230) target = $region52
        $region51: #{tpu_custom_call.1} parent=39 // pred_region
          %233 = dma.done [#allocation6], 128
        $region52: #{tpu_custom_call.1} parent=39 // pred_fallthru
          _
        %p234 = scmp.lt.s32.totalorder %s21, 1
        %s235 = scalar_select %p234, %s21, 1
        %s236 = smul.addr %s235, 2
        %s237 = smul.addr %s236, 8
        %s238 = scalar_lea.vmem %s0, %s237
        %p239 = pneg %p42
        %p240 = pneg %p39
        %p241 = pneg %p63
        %p242 = pneg %p60
        %p243 = pneg %p84
        %p244 = pneg %p81
        %p245 = pneg %p105
        %p246 = pneg %p102
        %p247 = pneg %p126
        %p248 = pneg %p123
        %p249 = pneg %p152
        %p250 = pneg %p149
        %s251 = sand.u32 %s139, 1
        %s252 = scalar_lea.sflag [#allocation4], %s251
        %s253 = sand.u32 %s139, 1
        %s254 = smul.addr %s253, 16
        %s255 = scalar_lea.vmem [#allocation8], %s254
        %p256 = scmp.lt.s32.totalorder %s21, 1
        %s257 = scalar_select %p256, %s21, 1
        %s258 = smul.addr %s257, 2
        %s259 = smul.addr %s258, 8
        %s260 = scalar_lea.vmem %s0, %s259
        %v261 = vld [vmem:[%s260] sm:$0xff]
        %v262 = vld [vmem:[%s260 + $0x8] sm:$0xff]
        %v263 = vld [vmem:[#allocation5] sm:$0xff]
        %v264 = vld [vmem:[#allocation2] sm:$0xff]
        %v265 = vld [vmem:[#allocation2 + $0x8] sm:$0xff]
        %267 = vset.pattern.permute.xlu0 4
        %268 = vperm.xlu0 %267, %v263
        %v269 = vpop.permute.xlu0 %268
        %v271 = vmul.f32 %v269, %v261
        %v272 = vmul.f32 %v269, %v262
        %273 = vrot.lane.b32.xlu0 %v261, 17
        %v274 = vpop.permute.xlu0 %273
        %275 = vrot.lane.b32.xlu0 %v262, 17
        %v276 = vpop.permute.xlu0 %275
        %v277 = vlaneseq
        %v278 = vand.u32 %v277, 127
        %vm279 = vcmp.lt.s32.totalorder %v278, 17
        %v280 = vsel %vm279, %v274, %v276
        %v281 = vsel %vm279, %v276, %v274
        %v282 = vlaneseq
        %v283 = vshrl.u32 %v282, 7
        %v284 = vsub.s32 0, %v283
        %v285 = vrot.slane %v264, %v284
        %v286 = vlaneseq
        %v287 = vshrl.u32 %v286, 7
        %v288 = vsub.s32 0, %v287
        %v289 = vrot.slane %v265, %v288
        %v290 = vmul.f32 %v281, %v285
        %v291 = vmul.f32 %v280, %v289
        %292 = vset.pattern.permute.xlu0 0
        %293 = vperm.xlu0 %292, %v263
        %v294 = vpop.permute.xlu0 %293
        %v296 = vmul.f32 %v294, %v290
        %v297 = vmul.f32 %v294, %v291
        %v298 = vadd.f32 %v271, %v296
        %v299 = vadd.f32 %v272, %v297
        %300 = vrot.lane.b32.xlu0 %v261, 16
        %v301 = vpop.permute.xlu0 %300
        %302 = vrot.lane.b32.xlu0 %v262, 16
        %v303 = vpop.permute.xlu0 %302
        %vm304 = vcmp.lt.s32.totalorder %v278, 16
        %v305 = vsel %vm304, %v301, %v303
        %v306 = vsel %vm304, %v303, %v301
        %v307 = vlaneseq
        %v308 = vshrl.u32 %v307, 7
        %v309 = vsub.s32 1, %v308
        %v310 = vrot.slane %v264, %v309
        %v311 = vlaneseq
        %v312 = vshrl.u32 %v311, 7
        %v313 = vsub.s32 1, %v312
        %v314 = vrot.slane %v265, %v313
        %v315 = vmul.f32 %v306, %v310
        %v316 = vmul.f32 %v305, %v314
        %317 = vset.pattern.permute.xlu0 1
        %318 = vperm.xlu0 %317, %v263
        %v319 = vpop.permute.xlu0 %318
        %v321 = vmul.f32 %v319, %v315
        %v322 = vmul.f32 %v319, %v316
        %v323 = vadd.f32 %v298, %v321
        %v324 = vadd.f32 %v299, %v322
        %325 = vrot.lane.b32.xlu0 %v261, 15
        %v326 = vpop.permute.xlu0 %325
        %327 = vrot.lane.b32.xlu0 %v262, 15
        %v328 = vpop.permute.xlu0 %327
        %vm329 = vcmp.lt.s32.totalorder %v278, 15
        %v330 = vsel %vm329, %v326, %v328
        %v331 = vsel %vm329, %v328, %v326
        %v332 = vlaneseq
        %v333 = vshrl.u32 %v332, 7
        %v334 = vsub.s32 2, %v333
        %v335 = vrot.slane %v264, %v334
        %v336 = vlaneseq
        %v337 = vshrl.u32 %v336, 7
        %v338 = vsub.s32 2, %v337
        %v339 = vrot.slane %v265, %v338
        %v340 = vmul.f32 %v331, %v335
        %v341 = vmul.f32 %v330, %v339
        %342 = vset.pattern.permute.xlu0 2
        %343 = vperm.xlu0 %342, %v263
        %v344 = vpop.permute.xlu0 %343
        %v346 = vmul.f32 %v344, %v340
        %v347 = vmul.f32 %v344, %v341
        %v348 = vadd.f32 %v323, %v346
        %v349 = vadd.f32 %v324, %v347
        %350 = vrot.lane.b32.xlu0 %v261, 1
        %v351 = vpop.permute.xlu0 %350
        %352 = vrot.lane.b32.xlu0 %v262, 1
        %v353 = vpop.permute.xlu0 %352
        %vm354 = vcmp.lt.s32.totalorder %v278, 1
        %v355 = vsel %vm354, %v351, %v353
        %v356 = vsel %vm354, %v353, %v351
        %v357 = vlaneseq
        %v358 = vshrl.u32 %v357, 7
        %v359 = vsub.s32 3, %v358
        %v360 = vrot.slane %v264, %v359
        %v361 = vlaneseq
        %v362 = vshrl.u32 %v361, 7
        %v363 = vsub.s32 3, %v362
        %v364 = vrot.slane %v265, %v363
        %v365 = vmul.f32 %v356, %v360
        %v366 = vmul.f32 %v355, %v364
        %367 = vset.pattern.permute.xlu0 3
        %368 = vperm.xlu0 %367, %v263
        %v369 = vpop.permute.xlu0 %368
        %v371 = vmul.f32 %v369, %v365
        %v372 = vmul.f32 %v369, %v366
        %v373 = vadd.f32 %v348, %v371
        %v374 = vadd.f32 %v349, %v372
        %375 = vrot.lane.b32.xlu0 %v261, 127
        %v376 = vpop.permute.xlu0 %375
        %377 = vrot.lane.b32.xlu0 %v262, 127
        %v378 = vpop.permute.xlu0 %377
        %vm379 = vcmp.lt.s32.totalorder %v278, 127
        %v380 = vsel %vm379, %v376, %v378
        %v381 = vsel %vm379, %v378, %v376
        %v382 = vlaneseq
        %v383 = vshrl.u32 %v382, 7
        %v384 = vsub.s32 4, %v383
        %v385 = vrot.slane %v264, %v384
        %v386 = vlaneseq
        %v387 = vshrl.u32 %v386, 7
        %v388 = vsub.s32 4, %v387
        %v389 = vrot.slane %v265, %v388
        %v390 = vmul.f32 %v380, %v385
        %v391 = vmul.f32 %v381, %v389
        %392 = vset.pattern.permute.xlu0 5
        %393 = vperm.xlu0 %392, %v263
        %v394 = vpop.permute.xlu0 %393
        %v396 = vmul.f32 %v394, %v390
        %v397 = vmul.f32 %v394, %v391
        %v398 = vadd.f32 %v373, %v396
        %v399 = vadd.f32 %v374, %v397
        %400 = vrot.lane.b32.xlu0 %v261, 113
        %v401 = vpop.permute.xlu0 %400
        %402 = vrot.lane.b32.xlu0 %v262, 113
        %v403 = vpop.permute.xlu0 %402
        %vm404 = vcmp.lt.s32.totalorder %v278, 113
        %v405 = vsel %vm404, %v401, %v403
        %v406 = vsel %vm404, %v403, %v401
        %v407 = vlaneseq
        %v408 = vshrl.u32 %v407, 7
        %v409 = vsub.s32 5, %v408
        %v410 = vrot.slane %v264, %v409
        %v411 = vlaneseq
        %v412 = vshrl.u32 %v411, 7
        %v413 = vsub.s32 5, %v412
        %v414 = vrot.slane %v265, %v413
        %v415 = vmul.f32 %v405, %v410
        %v416 = vmul.f32 %v406, %v414
        %417 = vset.pattern.permute.xlu0 6
        %418 = vperm.xlu0 %417, %v263
        %v419 = vpop.permute.xlu0 %418
        %v421 = vmul.f32 %v419, %v415
        %v422 = vmul.f32 %v419, %v416
        %v423 = vadd.f32 %v398, %v421
        %v424 = vadd.f32 %v399, %v422
        %425 = vrot.lane.b32.xlu0 %v261, 112
        %v426 = vpop.permute.xlu0 %425
        %427 = vrot.lane.b32.xlu0 %v262, 112
        %v428 = vpop.permute.xlu0 %427
        %vm429 = vcmp.lt.s32.totalorder %v278, 112
        %v430 = vsel %vm429, %v426, %v428
        %v431 = vsel %vm429, %v428, %v426
        %v432 = vlaneseq
        %v433 = vshrl.u32 %v432, 7
        %v434 = vsub.s32 6, %v433
        %v435 = vrot.slane %v264, %v434
        %v436 = vlaneseq
        %v437 = vshrl.u32 %v436, 7
        %v438 = vsub.s32 6, %v437
        %v439 = vrot.slane %v265, %v438
        %v440 = vmul.f32 %v430, %v435
        %v441 = vmul.f32 %v431, %v439
        %442 = vset.pattern.permute.xlu0 7
        %443 = vperm.xlu0 %442, %v263
        %v444 = vpop.permute.xlu0 %443
        %v446 = vmul.f32 %v444, %v440
        %v447 = vmul.f32 %v444, %v441
        %v448 = vadd.f32 %v423, %v446
        %v449 = vadd.f32 %v424, %v447
        %450 = vrot.lane.b32.xlu0 %v261, 111
        %v451 = vpop.permute.xlu0 %450
        %452 = vrot.lane.b32.xlu0 %v262, 111
        %v453 = vpop.permute.xlu0 %452
        %vm454 = vcmp.lt.s32.totalorder %v278, 111
        %v455 = vsel %vm454, %v451, %v453
        %v456 = vsel %vm454, %v453, %v451
        %v457 = vlaneseq
        %v458 = vshrl.u32 %v457, 7
        %v459 = vsub.s32 7, %v458
        %v460 = vrot.slane %v264, %v459
        %v461 = vlaneseq
        %v462 = vshrl.u32 %v461, 7
        %v463 = vsub.s32 7, %v462
        %v464 = vrot.slane %v265, %v463
        %v465 = vmul.f32 %v455, %v460
        %v466 = vmul.f32 %v456, %v464
        %467 = vset.pattern.permute.xlu0 8
        %468 = vperm.xlu0 %467, %v263
        %v469 = vpop.permute.xlu0 %468
        %v471 = vmul.f32 %v469, %v465
        %v472 = vmul.f32 %v469, %v466
        %v473 = vadd.f32 %v448, %v471
        %v474 = vadd.f32 %v449, %v472
        %v475 = vld [vmem:[%s3] sm:$0xff]
        %v476 = vld [vmem:[%s3 + $0x8] sm:$0xff]
        %v477 = vld [vmem:[%s3 + $0x10] sm:$0xff]
        %vm478 = vcmask 64512
        %v480 = vsel %vm478, %v475, 0
        %v483 = vsel %vm478, %v476, 0
        %v486 = vsel %vm478, %v477, 0
        %488 = vmatprep.subr.mxu0 %v474
        %489 = vmatpush1.msra.mxu0 %v473
        %490 = vmatprep.subr.mxu0 0.0
        %491 = vmatpush1.msra.mxu0 0.0
        %492 = vmatprep.subr.mxu0 0.0
        %493 = vmatpush1.msra.mxu0 0.0
        %494 = vmatprep.subr.mxu0 0.0
        %495 = vmatpush1.msra.mxu0 0.0
        %496 = vmatprep.subr.mxu0 0.0
        %497 = vmatpush1.msra.mxu0 0.0
        %498 = vmatprep.subr.mxu0 0.0
        %499 = vmatpush1.msra.mxu0 0.0
        %500 = vmatprep.subr.mxu0 0.0
        %501 = vmatpush1.msra.mxu0 0.0
        %502 = vmatprep.subr.mxu0 0.0
        %503 = vmatpush1.msra.mxu0 0.0
        %504 = vmatprep.subr.mxu0 0.0
        %505 = vmatpush1.msra.mxu0 0.0
        %506 = vmatprep.subr.mxu0 0.0
        %507 = vmatpush1.msra.mxu0 0.0
        %508 = vmatprep.subr.mxu0 0.0
        %509 = vmatpush1.msra.mxu0 0.0
        %510 = vmatprep.subr.mxu0 0.0
        %511 = vmatpush1.msra.mxu0 0.0
        %512 = vmatprep.subr.mxu0 0.0
        %513 = vmatpush1.msra.mxu0 0.0
        %514 = vmatprep.subr.mxu0 0.0
        %515 = vmatpush1.msra.mxu0 0.0
        %516 = vmatprep.subr.mxu0 0.0
        %517 = vmatpush1.msra.mxu0 0.0
        %518 = vmatprep.subr.mxu0 0.0
        %519 = vmatpush1.msra.mxu0 0.0
        %520 = vmatprep.subr.mxu0 0.0
        %521 = vmatpush1.msra.mxu0 0.0
        %522 = vmatprep.subr.mxu0 0.0
        %523 = vmatpush1.msra.mxu0 0.0
        %524 = vmatprep.subr.mxu0 0.0
        %525 = vmatpush1.msra.mxu0 0.0
        %526 = vmatprep.subr.mxu0 0.0
        %527 = vmatpush1.msra.mxu0 0.0
        %528 = vmatprep.subr.mxu0 0.0
        %529 = vmatpush1.msra.mxu0 0.0
        %530 = vmatprep.subr.mxu0 0.0
        %531 = vmatpush1.msra.mxu0 0.0
        %532 = vmatprep.subr.mxu0 0.0
        %533 = vmatpush1.msra.mxu0 0.0
        %534 = vmatprep.subr.mxu0 0.0
        %535 = vmatpush1.msra.mxu0 0.0
        %536 = vmatprep.subr.mxu0 0.0
        %537 = vmatpush1.msra.mxu0 0.0
        %538 = vmatprep.subr.mxu0 0.0
        %539 = vmatpush1.msra.mxu0 0.0
        %540 = vmatprep.subr.mxu0 0.0
        %541 = vmatpush1.msra.mxu0 0.0
        %542 = vmatprep.subr.mxu0 0.0
        %543 = vmatpush1.msra.mxu0 0.0
        %544 = vmatprep.subr.mxu0 0.0
        %545 = vmatpush1.msra.mxu0 0.0
        %546 = vmatprep.subr.mxu0 0.0
        %547 = vmatpush1.msra.mxu0 0.0
        %548 = vmatprep.subr.mxu0 0.0
        %549 = vmatpush1.msra.mxu0 0.0
        %550 = vmatprep.subr.mxu0 0.0
        %551 = vmatpush1.msra.mxu0 0.0
        %552 = vmatprep.mubr.f32.mxu0 0.0
        %553 = vmatmul.mubr.f32.gmra.mrb[0].mxu0 %v480
        %v554 = vpop.f32.mrb[0].mxu0
        %v555 = vadd.f32 0.0, %v554
        %v556 = vpop.f32.mrb[0].mxu0
        %v557 = vadd.f32 0.0, %v556
        %558 = vmatprep.mubr.f32.mxu0 0.0
        %559 = vmatmul.mubr.f32.gmra.mrb[0].mxu0 %v483
        %v560 = vpop.f32.mrb[0].mxu0
        %v561 = vadd.f32 0.0, %v560
        %v562 = vpop.f32.mrb[0].mxu0
        %v563 = vadd.f32 0.0, %v562
        %564 = vmatprep.mubr.f32.mxu0 0.0
        %565 = vmatmul.mubr.f32.gmra.mrb[0].mxu0 %v486
        %v566 = vpop.f32.mrb[0].mxu0
        %v567 = vadd.f32 0.0, %v566
        %v568 = vpop.f32.mrb[0].mxu0
        %v569 = vadd.f32 0.0, %v568
        %570 = vdwg.mxu0
        %v571 = vmul.f32 %v555, %v555
        %v572 = vmul.f32 %v557, %v557
        %v573 = vadd.f32 %v571, %v572
        %574 = vadd.xlane.f32.xlu0 %v573
        %v575 = vpop.xlane.xlu0 %574
        %v576 = vmul.f32 %v561, %v561
        %v577 = vmul.f32 %v563, %v563
        %v578 = vadd.f32 %v576, %v577
        %579 = vadd.xlane.f32.xlu0 %v578
        %v580 = vpop.xlane.xlu0 %579
        %vm581 = vcmp.ge.f32.partialorder %v575, 1e-24
        %v582 = vrsqrt.pop %v575
        %v583 = vsel %vm581, %v582, 1e+12
        %v584 = vmul.f32 %v555, %v583
        %v585 = vmul.f32 %v557, %v583
        %vm586 = vcmp.ge.f32.partialorder %v580, 1e-24
        %v587 = vrsqrt.pop %v580
        %v588 = vsel %vm586, %v587, 1e+12
        %v589 = vmul.f32 %v561, %v588
        %v590 = vmul.f32 %v563, %v588
        %591 = vmatprep.subr.mxu0 %v590
        %592 = vmatpush1.xpose.msra.mxu0 %v589
        %593 = vmatprep.subr.mxu0 0.0
        %594 = vmatpush1.xpose.msra.mxu0 0.0
        %595 = vmatprep.subr.mxu0 0.0
        %596 = vmatpush1.xpose.msra.mxu0 0.0
        %597 = vmatprep.subr.mxu0 0.0
        %598 = vmatpush1.xpose.msra.mxu0 0.0
        %599 = vmatprep.subr.mxu0 0.0
        %600 = vmatpush1.xpose.msra.mxu0 0.0
        %601 = vmatprep.subr.mxu0 0.0
        %602 = vmatpush1.xpose.msra.mxu0 0.0
        %603 = vmatprep.subr.mxu0 0.0
        %604 = vmatpush1.xpose.msra.mxu0 0.0
        %605 = vmatprep.subr.mxu0 0.0
        %606 = vmatpush1.xpose.msra.mxu0 0.0
        %607 = vmatprep.subr.mxu0 0.0
        %608 = vmatpush1.xpose.msra.mxu0 0.0
        %609 = vmatprep.subr.mxu0 0.0
        %610 = vmatpush1.xpose.msra.mxu0 0.0
        %611 = vmatprep.subr.mxu0 0.0
        %612 = vmatpush1.xpose.msra.mxu0 0.0
        %613 = vmatprep.subr.mxu0 0.0
        %614 = vmatpush1.xpose.msra.mxu0 0.0
        %615 = vmatprep.subr.mxu0 0.0
        %616 = vmatpush1.xpose.msra.mxu0 0.0
        %617 = vmatprep.subr.mxu0 0.0
        %618 = vmatpush1.xpose.msra.mxu0 0.0
        %619 = vmatprep.subr.mxu0 0.0
        %620 = vmatpush1.xpose.msra.mxu0 0.0
        %621 = vmatprep.subr.mxu0 0.0
        %622 = vmatpush1.xpose.msra.mxu0 0.0
        %623 = vmatprep.subr.mxu0 0.0
        %624 = vmatpush1.xpose.msra.mxu0 0.0
        %625 = vmatprep.subr.mxu0 0.0
        %626 = vmatpush1.xpose.msra.mxu0 0.0
        %627 = vmatprep.subr.mxu0 0.0
        %628 = vmatpush1.xpose.msra.mxu0 0.0
        %629 = vmatprep.subr.mxu0 0.0
        %630 = vmatpush1.xpose.msra.mxu0 0.0
        %631 = vmatprep.subr.mxu0 0.0
        %632 = vmatpush1.xpose.msra.mxu0 0.0
        %633 = vmatprep.subr.mxu0 0.0
        %634 = vmatpush1.xpose.msra.mxu0 0.0
        %635 = vmatprep.subr.mxu0 0.0
        %636 = vmatpush1.xpose.msra.mxu0 0.0
        %637 = vmatprep.subr.mxu0 0.0
        %638 = vmatpush1.xpose.msra.mxu0 0.0
        %639 = vmatprep.subr.mxu0 0.0
        %640 = vmatpush1.xpose.msra.mxu0 0.0
        %641 = vmatprep.subr.mxu0 0.0
        %642 = vmatpush1.xpose.msra.mxu0 0.0
        %643 = vmatprep.subr.mxu0 0.0
        %644 = vmatpush1.xpose.msra.mxu0 0.0
        %645 = vmatprep.subr.mxu0 0.0
        %646 = vmatpush1.xpose.msra.mxu0 0.0
        %647 = vmatprep.subr.mxu0 0.0
        %648 = vmatpush1.xpose.msra.mxu0 0.0
        %649 = vmatprep.subr.mxu0 0.0
        %650 = vmatpush1.xpose.msra.mxu0 0.0
        %651 = vmatprep.subr.mxu0 0.0
        %652 = vmatpush1.xpose.msra.mxu0 0.0
        %653 = vmatprep.subr.mxu0 0.0
        %654 = vmatpush1.xpose.msra.mxu0 0.0
        %655 = vmatprep.mubr.f32.mxu0 %v585
        %656 = vmatmul.mubr.f32.gmra.mrb[0].mxu0 %v584
        %v657 = vpop.f32.mrb[0].mxu0
        %v658 = vadd.f32 0.0, %v657
        %v659 = vpop.f32.mrb[0].mxu0
        %660 = vdwg.mxu0
        %v661 = vsel %vm478, %v658, -inf
        %662 = vmax.xlane.f32.xlu0 %v661
        %v663 = vpop.xlane.xlu0 %662
        %v664 = vsub.f32 %v658, %v663
        %v665 = vmul.f32 %v664, 1.442695
        %v666 = vpow.pop %v665
        %v667 = vsel %vm478, %v666, 0.0
        %668 = vadd.xlane.f32.xlu0 %v667
        %v669 = vpop.xlane.xlu0 %668
        %v670 = vrcp.pop %v669
        %v671 = vmul.f32 %v666, %v670
        %v673 = vsel %vm478, %v671, 0
        %675 = vmatprep.subr.mxu0 %v569
        %676 = vmatpush1.msra.mxu0 %v567
        %677 = vmatprep.subr.mxu0 0.0
        %678 = vmatpush1.msra.mxu0 0.0
        %679 = vmatprep.subr.mxu0 0.0
        %680 = vmatpush1.msra.mxu0 0.0
        %681 = vmatprep.subr.mxu0 0.0
        %682 = vmatpush1.msra.mxu0 0.0
        %683 = vmatprep.subr.mxu0 0.0
        %684 = vmatpush1.msra.mxu0 0.0
        %685 = vmatprep.subr.mxu0 0.0
        %686 = vmatpush1.msra.mxu0 0.0
        %687 = vmatprep.subr.mxu0 0.0
        %688 = vmatpush1.msra.mxu0 0.0
        %689 = vmatprep.subr.mxu0 0.0
        %690 = vmatpush1.msra.mxu0 0.0
        %691 = vmatprep.subr.mxu0 0.0
        %692 = vmatpush1.msra.mxu0 0.0
        %693 = vmatprep.subr.mxu0 0.0
        %694 = vmatpush1.msra.mxu0 0.0
        %695 = vmatprep.subr.mxu0 0.0
        %696 = vmatpush1.msra.mxu0 0.0
        %697 = vmatprep.subr.mxu0 0.0
        %698 = vmatpush1.msra.mxu0 0.0
        %699 = vmatprep.subr.mxu0 0.0
        %700 = vmatpush1.msra.mxu0 0.0
        %701 = vmatprep.subr.mxu0 0.0
        %702 = vmatpush1.msra.mxu0 0.0
        %703 = vmatprep.subr.mxu0 0.0
        %704 = vmatpush1.msra.mxu0 0.0
        %705 = vmatprep.subr.mxu0 0.0
        %706 = vmatpush1.msra.mxu0 0.0
        %707 = vmatprep.subr.mxu0 0.0
        %708 = vmatpush1.msra.mxu0 0.0
        %709 = vmatprep.subr.mxu0 0.0
        %710 = vmatpush1.msra.mxu0 0.0
        %711 = vmatprep.subr.mxu0 0.0
        %712 = vmatpush1.msra.mxu0 0.0
        %713 = vmatprep.subr.mxu0 0.0
        %714 = vmatpush1.msra.mxu0 0.0
        %715 = vmatprep.subr.mxu0 0.0
        %716 = vmatpush1.msra.mxu0 0.0
        %717 = vmatprep.subr.mxu0 0.0
        %718 = vmatpush1.msra.mxu0 0.0
        %719 = vmatprep.subr.mxu0 0.0
        %720 = vmatpush1.msra.mxu0 0.0
        %721 = vmatprep.subr.mxu0 0.0
        %722 = vmatpush1.msra.mxu0 0.0
        %723 = vmatprep.subr.mxu0 0.0
        %724 = vmatpush1.msra.mxu0 0.0
        %725 = vmatprep.subr.mxu0 0.0
        %726 = vmatpush1.msra.mxu0 0.0
        %727 = vmatprep.subr.mxu0 0.0
        %728 = vmatpush1.msra.mxu0 0.0
        %729 = vmatprep.subr.mxu0 0.0
        %730 = vmatpush1.msra.mxu0 0.0
        %731 = vmatprep.subr.mxu0 0.0
        %732 = vmatpush1.msra.mxu0 0.0
        %733 = vmatprep.subr.mxu0 0.0
        %734 = vmatpush1.msra.mxu0 0.0
        %735 = vmatprep.subr.mxu0 0.0
        %736 = vmatpush1.msra.mxu0 0.0
        %737 = vmatprep.subr.mxu0 0.0
        %738 = vmatpush1.msra.mxu0 0.0
        %739 = vmatprep.mubr.f32.mxu0 0.0
        %740 = vmatmul.mubr.f32.gmra.mrb[0].mxu0 %v673
        %v741 = vpop.f32.mrb[0].mxu0
        %v742 = vadd.f32 0.0, %v741
        %v743 = vpop.f32.mrb[0].mxu0
        %v744 = vadd.f32 0.0, %v743
        %745 = vdwg.mxu0
        %v746 = vld [vmem:[#allocation7] sm:$0xff]
        %v748 = vsel %vm478, %v746, 0
        %750 = vmatprep.subr.mxu0 %v744
        %751 = vmatpush1.msra.mxu0 %v742
        %752 = vmatprep.subr.mxu0 0.0
        %753 = vmatpush1.msra.mxu0 0.0
        %754 = vmatprep.subr.mxu0 0.0
        %755 = vmatpush1.msra.mxu0 0.0
        %756 = vmatprep.subr.mxu0 0.0
        %757 = vmatpush1.msra.mxu0 0.0
        %758 = vmatprep.subr.mxu0 0.0
        %759 = vmatpush1.msra.mxu0 0.0
        %760 = vmatprep.subr.mxu0 0.0
        %761 = vmatpush1.msra.mxu0 0.0
        %762 = vmatprep.subr.mxu0 0.0
        %763 = vmatpush1.msra.mxu0 0.0
        %764 = vmatprep.subr.mxu0 0.0
        %765 = vmatpush1.msra.mxu0 0.0
        %766 = vmatprep.subr.mxu0 0.0
        %767 = vmatpush1.msra.mxu0 0.0
        %768 = vmatprep.subr.mxu0 0.0
        %769 = vmatpush1.msra.mxu0 0.0
        %770 = vmatprep.subr.mxu0 0.0
        %771 = vmatpush1.msra.mxu0 0.0
        %772 = vmatprep.subr.mxu0 0.0
        %773 = vmatpush1.msra.mxu0 0.0
        %774 = vmatprep.subr.mxu0 0.0
        %775 = vmatpush1.msra.mxu0 0.0
        %776 = vmatprep.subr.mxu0 0.0
        %777 = vmatpush1.msra.mxu0 0.0
        %778 = vmatprep.subr.mxu0 0.0
        %779 = vmatpush1.msra.mxu0 0.0
        %780 = vmatprep.subr.mxu0 0.0
        %781 = vmatpush1.msra.mxu0 0.0
        %782 = vmatprep.subr.mxu0 0.0
        %783 = vmatpush1.msra.mxu0 0.0
        %784 = vmatprep.subr.mxu0 0.0
        %785 = vmatpush1.msra.mxu0 0.0
        %786 = vmatprep.subr.mxu0 0.0
        %787 = vmatpush1.msra.mxu0 0.0
        %788 = vmatprep.subr.mxu0 0.0
        %789 = vmatpush1.msra.mxu0 0.0
        %790 = vmatprep.subr.mxu0 0.0
        %791 = vmatpush1.msra.mxu0 0.0
        %792 = vmatprep.subr.mxu0 0.0
        %793 = vmatpush1.msra.mxu0 0.0
        %794 = vmatprep.subr.mxu0 0.0
        %795 = vmatpush1.msra.mxu0 0.0
        %796 = vmatprep.subr.mxu0 0.0
        %797 = vmatpush1.msra.mxu0 0.0
        %798 = vmatprep.subr.mxu0 0.0
        %799 = vmatpush1.msra.mxu0 0.0
        %800 = vmatprep.subr.mxu0 0.0
        %801 = vmatpush1.msra.mxu0 0.0
        %802 = vmatprep.subr.mxu0 0.0
        %803 = vmatpush1.msra.mxu0 0.0
        %804 = vmatprep.subr.mxu0 0.0
        %805 = vmatpush1.msra.mxu0 0.0
        %806 = vmatprep.subr.mxu0 0.0
        %807 = vmatpush1.msra.mxu0 0.0
        %808 = vmatprep.subr.mxu0 0.0
        %809 = vmatpush1.msra.mxu0 0.0
        %810 = vmatprep.subr.mxu0 0.0
        %811 = vmatpush1.msra.mxu0 0.0
        %812 = vmatprep.subr.mxu0 0.0
        %813 = vmatpush1.msra.mxu0 0.0
        %814 = vmatprep.mubr.f32.mxu0 0.0
        %815 = vmatmul.mubr.f32.gmra.mrb[0].mxu0 %v748
        %v816 = vpop.f32.mrb[0].mxu0
        %v817 = vadd.f32 0.0, %v816
        %v818 = vpop.f32.mrb[0].mxu0
        %v819 = vadd.f32 0.0, %v818
        %820 = vdwg.mxu0
        %821 = vst [vmem:[%s255] sm:$0xff] %v817
        %822 = vst [vmem:[%s255 + $0x8] sm:$0xff] %v819
        %s823 = sand.u32 %s139, 1
        %s824 = scalar_lea.sflag [#allocation4], %s823
        %s825 = sand.u32 %s139, 1
        %s826 = smul.addr %s825, 16
        %s827 = scalar_lea.vmem [#allocation8], %s826
        // Predicated region
        $region53: #{tpu_custom_call.1} parent=39 // pred_check
          %p828 = pneg %p149
        $region54: #{tpu_custom_call.1} parent=39 // pred_check_branch
          %830 = sbr.rel (%p828) target = $region56
        $region55: #{tpu_custom_call.1} parent=39 // pred_region
          %s832 = ssub.s32 256, 256
          %833 = vsyncadd %s824, %s832
          %s834 = smul.addr %s21, 2
          %s835 = smul.addr %s834, 128
          %s836 = scalar_lea.hbm %s5, %s835
          %s838 = sshll.u32 %s827, 4
          %s839 = int_to_ptr.vmem [resolvable:$true] %s838
          %841 = dma.vmem_to_hbm [thread:$0]  %s839, 256, %s836, %s824
        $region56: #{tpu_custom_call.1} parent=39 // pred_fallthru
          _
      $region40: #{tpu_custom_call.1} parent=5 // pred_fallthru
        _
      %p842 = scmp.le.s32.totalorder 2, %s16
      // Predicated region
      $region57: #{tpu_custom_call.1} parent=5 // pred_check
        %p843 = pneg %p842
      $region58: #{tpu_custom_call.1} parent=5 // pred_check_branch
        %845 = sbr.rel (%p843) target = $region60
      $region59: #{tpu_custom_call.1} parent=5 // pred_region
        %s846 = ssub.s32 %s16, 2
        // Predicated region
        $region61: #{tpu_custom_call.1} parent=59 // pred_check
          %p847 = pneg %p155
        $region62: #{tpu_custom_call.1} parent=59 // pred_check_branch
          %849 = sbr.rel (%p847) target = $region64
        $region63: #{tpu_custom_call.1} parent=59 // pred_region
          %s850 = sand.u32 %s140, 1
          %s851 = scalar_lea.sflag [#allocation4], %s850
          %s852 = sand.u32 %s140, 1
          %s853 = smul.addr %s852, 16
          %s854 = scalar_lea.vmem [#allocation8], %s853
          %855 = dma.done %s851, 256
        $region64: #{tpu_custom_call.1} parent=59 // pred_fallthru
          _
      $region60: #{tpu_custom_call.1} parent=5 // pred_fallthru
        _
    $region6: #{tpu_custom_call.1} parent=1 // loop_footer
      %s20 = sadd.s32 1, %s16
    $region7: #{tpu_custom_call.1} parent=1 // loop_footer_branch
      %15 = sbr.rel target = $region3
    $region8: #{tpu_custom_call.1} parent=1 // loop_exit
      _
    %856 = vsyncpa [#allocation3], 1
    %s857 = scalar_lea.sflag [#allocation3], 1
    %858 = vsyncpa %s857, 1
    %859 = vsyncpa [#allocation6], 1
    %860 = vsyncpa [#allocation4], 1
    %s861 = scalar_lea.sflag [#allocation4], 1
    %862 = vsyncpa %s861, 1

</llo_original>
